<compile_context>
chip_gen: v6e
topology: v6e:2x2x1
jax: 0.10.0
libtpu: 0.0.40
codegen_flags: <defaults>
</compile_context>

<pallas_src>
import jax
import jax.numpy as jnp
from jax import lax
from jax.experimental import pallas as pl
from jax.experimental.pallas import tpu as pltpu

LANES = 128
ACC_SUBLANES = 8  # f32 accumulator block is exactly one vreg: (8, 128)


def _round_up(x, m):
    return ((x + m - 1) // m) * m


def _sublane_pack(dtype):
    # Minimum sublane tile for a packed dtype: 8 (f32), 16 (bf16/f16), 32 (i8/fp8).
    itemsize = jnp.dtype(dtype).itemsize
    if itemsize >= 4:
        return 8
    return 8 * (4 // itemsize)


def _num_tensorcores():
    # 2 TensorCores per chip on v7x (and megacore v4/v5p); 1 on v5e/v6e.
    # NOTE(perf review): if the trace shows the size-2 "parallel" axis not
    # sharding across both cores on v7x, switch it to pltpu.CORE_PARALLEL.
    try:
        kind = jax.devices()[0].device_kind.lower().replace(" ", "")
        if "v7" in kind or "v5p" in kind or ("v4" in kind and "lite" not in kind):
            return 2
    except Exception:
        pass
    return 1


def _make_mse_partial_kernel(tr, rows, inner, has_ragged, has_idle):
    """Kernel accumulating per-core (1, 8, 128) f32 partial sums of (a-b)^2."""

    def _accum(a_ref, b_ref, o_ref, row0, masked):
        a = a_ref[...].astype(jnp.float32)
        b = b_ref[...].astype(jnp.float32)
        d = a - b
        sq = d * d
        if masked:
            # Only the single genuinely-ragged block runs this path.
            rid = lax.broadcasted_iota(jnp.int32, (tr, LANES), 0) + row0
            sq = jnp.where(rid < rows, sq, 0.0)
        # Fold tr rows into one vreg-shaped (8, 128) partial sum: pure VPU adds.
        psum = sq.reshape(tr // ACC_SUBLANES, ACC_SUBLANES, LANES).sum(axis=0)
        o_ref[...] += psum.reshape(1, ACC_SUBLANES, LANES)

    def kernel(a_ref, b_ref, o_ref):
        c = pl.program_id(0)
        s = pl.program_id(1)
        blk = c * inner + s
        row0 = blk * tr

        @pl.when(s == 0)
        def _():
            o_ref[...] = jnp.zeros_like(o_ref)

        if not has_ragged and not has_idle:
            # Hot path: every block is full and real -> no masks, no branches.
            _accum(a_ref, b_ref, o_ref, row0, masked=False)
        elif not has_ragged:
            # Only idle duplicate steps possible (clamped index): scalar skip.
            @pl.when(row0 < rows)
            def _():
                _accum(a_ref, b_ref, o_ref, row0, masked=False)
        else:
            full = row0 + tr <= rows

            @pl.when(full)
            def _():
                _accum(a_ref, b_ref, o_ref, row0, masked=False)

            # Ragged block (row0 < rows < row0 + tr) pays the mask; idle
            # duplicate steps (row0 >= rows) skip accumulation entirely.
            @pl.when(jnp.logical_and(jnp.logical_not(full), row0 < rows))
            def _():
                _accum(a_ref, b_ref, o_ref, row0, masked=True)

    return kernel


def feat_recon_loss(feat_recon, feat_real, *, tile_rows=None, ncores=None):
    """== nn.MSELoss()(feat_recon, feat_real).mean()  (mean over all elements)."""
    assert feat_recon.shape == feat_real.shape, (feat_recon.shape, feat_real.shape)
    n = feat_recon.size

    a = feat_recon.reshape(-1)
    b = feat_real.reshape(-1)

    main = (n // LANES) * LANES
    tail_sum = jnp.float32(0.0)
    if main < n:
        # Tiny (<128 elem) lane tail: summed in plain JAX.
        # TODO(synk): this prefix slice copies a/b when size % 128 != 0; the
        # common feature-map case (size % 128 == 0) stays copy-free.
        ta = a[main:].astype(jnp.float32)
        tb = b[main:].astype(jnp.float32)
        tail_sum = jnp.sum((ta - tb) ** 2)
        a = a[:main]
        b = b[:main]

    if main == 0:
        return (tail_sum / jnp.float32(n)).astype(jnp.float32)

    rows = main // LANES
    a2 = a.reshape(rows, LANES)  # contiguous reshape: no copy, native dtype
    b2 = b.reshape(rows, LANES)

    a_item = jnp.dtype(a2.dtype).itemsize
    b_item = jnp.dtype(b2.dtype).itemsize
    # Block rows must satisfy the packed-dtype sublane tile of BOTH inputs and
    # of the f32 accumulator fold (8).
    pack = max(ACC_SUBLANES, _sublane_pack(a2.dtype), _sublane_pack(b2.dtype))

    if tile_rows is None:
        # ~2 MiB per input block: 4096 rows f32 / 8192 rows bf16. Keeps the
        # fixed per-step overhead small on v7x (3.2 TB/s) while the
        # double-buffered footprint (~8 MiB) fits v5e's 16 MiB scoped default.
        tile_rows = (2 * 1024 * 1024) // (LANES * max(a_item, b_item))
    tr = _round_up(min(int(tile_rows), rows), pack)

    total_blocks = pl.cdiv(rows, tr)
    if ncores is None:
        ncores = _num_tensorcores()
    ncores = max(1, min(int(ncores), total_blocks))
    inner = pl.cdiv(total_blocks, ncores)

    has_ragged = (rows % tr) != 0
    has_idle = (ncores * inner) != total_blocks

    def in_map(c, s):
        # Clamp so no DMA window starts past the array; the idle duplicate
        # step this creates is skipped by a scalar pl.when inside the kernel.
        return (jnp.minimum(c * inner + s, total_blocks - 1), 0)

    kernel = _make_mse_partial_kernel(tr, rows, inner, has_ragged, has_idle)

    params = dict(dimension_semantics=("parallel", "arbitrary"))
    # Default tiles stay under every generation's scoped-VMEM default; only
    # raise the limit if a caller asks for oversized tiles.
    block_bytes = tr * LANES * (a_item + b_item)
    vmem_need = 2 * block_bytes + (2 << 20)
    if vmem_need > 14 * 1024 * 1024:
        params["vmem_limit_bytes"] = int(vmem_need)

    cost = pl.CostEstimate(
        flops=3 * main,
        transcendentals=0,
        bytes_accessed=main * (a_item + b_item) + ncores * ACC_SUBLANES * LANES * 4,
    )

    partials = pl.pallas_call(
        kernel,
        out_shape=jax.ShapeDtypeStruct((ncores, ACC_SUBLANES, LANES), jnp.float32),
        grid_spec=pltpu.PrefetchScalarGridSpec(
            num_scalar_prefetch=0,
            grid=(ncores, inner),
            in_specs=[
                pl.BlockSpec((tr, LANES), in_map),
                pl.BlockSpec((tr, LANES), in_map),
            ],
            out_specs=pl.BlockSpec((1, ACC_SUBLANES, LANES), lambda c, s: (c, 0, 0)),
        ),
        compiler_params=pltpu.CompilerParams(**params),
        cost_estimate=cost,
    )(a2, b2)

    sq_sum = jnp.sum(partials) + tail_sum
    return (sq_sum / jnp.float32(n)).astype(jnp.float32)


def feat_recon_loss_module(batch):
    """Mirrors FeatReconLoss.forward(batch)."""
    return feat_recon_loss(batch["feat_recon"], batch["feat_real"])


if __name__ == "__main__":
    key = jax.random.PRNGKey(0)
    k1, k2, k3, k4, k5, k6, k7, k8 = jax.random.split(key, 8)

    # Small NCHW feature maps, consistent with a feature-reconstruction loss.
    feat_recon = jax.random.normal(k1, (2, 4, 16, 16), dtype=jnp.float32)
    feat_real = jax.random.normal(k2, (2, 4, 16, 16), dtype=jnp.float32)
    loss = feat_recon_loss_module({"feat_recon": feat_recon, "feat_real": feat_real})
    jax.block_until_ready(loss)
    ref = jnp.mean((feat_recon - feat_real) ** 2)
    assert jnp.allclose(loss, ref, rtol=1e-6, atol=1e-6), (loss, ref)

    # bf16, ragged final row-block (exercises the gated masked path + bf16 pack).
    x = jax.random.normal(k3, (3, 8, 20, 16), dtype=jnp.bfloat16)
    y = jax.random.normal(k4, (3, 8, 20, 16), dtype=jnp.bfloat16)
    loss2 = feat_recon_loss(x, y, tile_rows=16)
    jax.block_until_ready(loss2)
    ref2 = jnp.mean((x.astype(jnp.float32) - y.astype(jnp.float32)) ** 2)
    assert jnp.allclose(loss2, ref2, rtol=1e-5, atol=1e-5), (loss2, ref2)

    # f32, odd block count with a forced 2-core split: exercises the
    # idle-duplicate-step skip and the ragged block on any hardware.
    u = jax.random.normal(k5, (5, 8, 128), dtype=jnp.float32)
    v = jax.random.normal(k6, (5, 8, 128), dtype=jnp.float32)
    loss3 = feat_recon_loss(u, v, tile_rows=16, ncores=2)
    jax.block_until_ready(loss3)
    ref3 = jnp.mean((u - v) ** 2)
    assert jnp.allclose(loss3, ref3, rtol=1e-6, atol=1e-6), (loss3, ref3)

    # size % 128 != 0: <128-element lane tail handled in plain JAX.
    p = jax.random.normal(k7, (2, 3, 50), dtype=jnp.float32)
    q = jax.random.normal(k8, (2, 3, 50), dtype=jnp.float32)
    loss4 = feat_recon_loss(p, q)
    jax.block_until_ready(loss4)
    ref4 = jnp.mean((p - q) ** 2)
    assert jnp.allclose(loss4, ref4, rtol=1e-6, atol=1e-6), (loss4, ref4)

    print("KERNEL_OK")
</pallas_src>

<mosaic_0001>
module attributes {stable_mosaic.version = 11 : i64} {
  func.func @kernel(%arg0: i32, %arg1: i32, %arg2: memref<16x128xf32, #tpu.memory_space<vmem>>, %arg3: memref<16x128xf32, #tpu.memory_space<vmem>>, %arg4: memref<1x8x128xf32, #tpu.memory_space<vmem>>) attributes {dimension_semantics = [#tpu.dimension_semantics<parallel>, #tpu.dimension_semantics<arbitrary>], iteration_bounds = array<i64: 1, 1>, scalar_prefetch = 0 : i64, scratch_operands = 0 : i64, tpu.core_type = #tpu.core_type<tc>, window_params = [{transform_indices = @transform_0, window_bounds = array<i64: 16, 128>}, {transform_indices = @transform_1, window_bounds = array<i64: 16, 128>}, {transform_indices = @transform_2, window_bounds = array<i64: 1, 8, 128>}]} {
    %c0_i32 = arith.constant 0 : i32
    %0 = arith.cmpi eq, %arg1, %c0_i32 : i32
    %1 = arith.extui %0 : i1 to i32
    %c0_i32_0 = arith.constant 0 : i32
    %2 = arith.cmpi ne, %1, %c0_i32_0 : i32
    scf.if %2 {
      %cst_10 = arith.constant 0.000000e+00 : f32
      %13 = vector.broadcast %cst_10 : f32 to vector<1x8x128xf32>
      %c0_11 = arith.constant 0 : index
      %c0_12 = arith.constant 0 : index
      %c0_13 = arith.constant 0 : index
      %14 = vector.load %arg4[%c0_11, %c0_12, %c0_13] : memref<1x8x128xf32, #tpu.memory_space<vmem>>, vector<1x8x128xf32>
      tpu.vector_store %arg4[%c0_11, %c0_12, %c0_13], %13 {strides = array<i32>} : memref<1x8x128xf32, #tpu.memory_space<vmem>>, vector<1x8x128xf32>,
    } else {
    }
    %c0 = arith.constant 0 : index
    %c0_1 = arith.constant 0 : index
    %3 = vector.load %arg2[%c0, %c0_1] : memref<16x128xf32, #tpu.memory_space<vmem>>, vector<16x128xf32>
    %c0_2 = arith.constant 0 : index
    %c0_3 = arith.constant 0 : index
    %4 = vector.load %arg3[%c0_2, %c0_3] : memref<16x128xf32, #tpu.memory_space<vmem>>, vector<16x128xf32>
    %5 = arith.subf %3, %4 : vector<16x128xf32>
    %6 = arith.mulf %5, %5 : vector<16x128xf32>
    %7 = vector.shape_cast %6 : vector<16x128xf32> to vector<2x8x128xf32>
    %cst = arith.constant dense<0.000000e+00> : vector<8x128xf32>
    %8 = vector.multi_reduction <add>, %7, %cst [0] : vector<2x8x128xf32> to vector<8x128xf32>
    %c0_4 = arith.constant 0 : index
    %c0_5 = arith.constant 0 : index
    %c0_6 = arith.constant 0 : index
    %9 = vector.load %arg4[%c0_4, %c0_5, %c0_6] : memref<1x8x128xf32, #tpu.memory_space<vmem>>, vector<1x8x128xf32>
    %10 = vector.shape_cast %8 : vector<8x128xf32> to vector<1x8x128xf32>
    %11 = arith.addf %9, %10 : vector<1x8x128xf32>
    %c0_7 = arith.constant 0 : index
    %c0_8 = arith.constant 0 : index
    %c0_9 = arith.constant 0 : index
    %12 = vector.load %arg4[%c0_7, %c0_8, %c0_9] : memref<1x8x128xf32, #tpu.memory_space<vmem>>, vector<1x8x128xf32>
    tpu.vector_store %arg4[%c0_7, %c0_8, %c0_9], %11 {strides = array<i32>} : memref<1x8x128xf32, #tpu.memory_space<vmem>>, vector<1x8x128xf32>,
    return
  }
  func.func @transform_0(%arg0: i32, %arg1: i32) -> (i32, i32) {
    %c1_i32 = arith.constant 1 : i32
    %0 = arith.muli %arg0, %c1_i32 : i32
    %1 = arith.addi %0, %arg1 : i32
    %c0_i32 = arith.constant 0 : i32
    %2 = arith.minsi %1, %c0_i32 : i32
    %c0_i32_0 = arith.constant 0 : i32
    %c0_i32_1 = arith.constant 0 : i32
    return %2, %c0_i32_0 : i32, i32
  }
  func.func @transform_1(%arg0: i32, %arg1: i32) -> (i32, i32) {
    %c1_i32 = arith.constant 1 : i32
    %0 = arith.muli %arg0, %c1_i32 : i32
    %1 = arith.addi %0, %arg1 : i32
    %c0_i32 = arith.constant 0 : i32
    %2 = arith.minsi %1, %c0_i32 : i32
    %c0_i32_0 = arith.constant 0 : i32
    %c0_i32_1 = arith.constant 0 : i32
    return %2, %c0_i32_0 : i32, i32
  }
  func.func @transform_2(%arg0: i32, %arg1: i32) -> (i32, i32, i32) {
    %c0_i32 = arith.constant 0 : i32
    %c0_i32_0 = arith.constant 0 : i32
    %c0_i32_1 = arith.constant 0 : i32
    return %arg0, %c0_i32, %c0_i32_0 : i32, i32, i32
  }
}

</mosaic_0001>

<llo_original>
// kernel: tpu_custom_call.1
$region0: #{tpu_custom_call.1}
  #allocation0 [shape = 'u32[]', space=smem, size = 0x4, offset = 0x4, fixed_abs, tag = 'smem constant byte address 0x4 - core index']
  #allocation1 [shape = 'u32[144,128]{1,0:T(1,128)}', space=vmem, size = 0x12000, scoped, tag = 'internal scratch']
  %s0 = inlined_call_operand.hbm [shape: f32[16,128], index: 0, kind: input, shape index: {}]
  %s1 = inlined_call_operand.hbm [shape: f32[16,128], index: 1, kind: input, shape index: {}]
  %s2 = inlined_call_operand.hbm [shape: f32[1,8,128], index: 2, kind: output, shape index: {}]
  %s3 = sld [smem:[#allocation0]]
  $region30: #{tpu_custom_call.1} parent=0
    _
  %s5 = ssub.s32 1, %s3
  %s6 = scalar_select 0, %s5, %s3
  $region1: #{tpu_custom_call.1} parent=0
    #allocation2 [shape = 'u8[8192]{0}', space=vmem, size = 0x2000, scoped, tag = 'input window, operand 0, single buffered']
    #allocation3 [shape = 's32[1]{0}', space=sflag, size = 0x4, scoped, tag = 'scoped memory for tpu_custom_call.1']
    #allocation4 [shape = 's32[1]{0}', space=sflag, size = 0x4, scoped, tag = 'scoped memory for tpu_custom_call.1']
    #allocation5 [shape = 'u8[8192]{0}', space=vmem, size = 0x2000, scoped, tag = 'input window, operand 1, single buffered']
    #allocation6 [shape = 's32[1]{0}', space=sflag, size = 0x4, scoped, tag = 'scoped memory for tpu_custom_call.1']
    #allocation7 [shape = 'u8[4096]{0}', space=vmem, size = 0x1000, scoped, tag = 'output window, operand 0, single buffered']
    %7 = vsyncpa [#allocation3], 0
    %8 = vsyncpa [#allocation6], 0
    %9 = vsyncpa [#allocation4], 0
    // Predicated region
    $region2: #{tpu_custom_call.1} parent=1 // pred_check
      _
    $region3: #{tpu_custom_call.1} parent=1 // pred_check_branch
      %11 = sbr.rel (0) target = $region5
    $region4: #{tpu_custom_call.1} parent=1 // pred_region
      %s12 = sadd.s32 0, 0
      %p13 = scmp.lt.s32.totalorder %s12, 0
      %s14 = scalar_select %p13, %s12, 0
      %s15 = smul.u32 2, %s14
      %s17 = ssub.s32 256, 256
      %18 = vsyncadd [#allocation3], %s17
      %s19 = smul.addr %s15, 128
      %s20 = scalar_lea.hbm %s0, %s19
      %s21 = sshll.u32 [#allocation2], 4
      %s22 = int_to_ptr.vmem [resolvable:$true] %s21
      %27 = dma.hbm_to_vmem [thread:$0]  %s20, 256, %s22, [#allocation3], 128, 128, 8
    $region5: #{tpu_custom_call.1} parent=1 // pred_fallthru
      _
    // Predicated region
    $region6: #{tpu_custom_call.1} parent=1 // pred_check
      _
    $region7: #{tpu_custom_call.1} parent=1 // pred_check_branch
      %29 = sbr.rel (0) target = $region9
    $region8: #{tpu_custom_call.1} parent=1 // pred_region
      %s30 = sadd.s32 0, 0
      %p31 = scmp.lt.s32.totalorder %s30, 0
      %s32 = scalar_select %p31, %s30, 0
      %s33 = smul.u32 2, %s32
      %s35 = ssub.s32 256, 256
      %36 = vsyncadd [#allocation6], %s35
      %s37 = smul.addr %s33, 128
      %s38 = scalar_lea.hbm %s1, %s37
      %s39 = sshll.u32 [#allocation5], 4
      %s40 = int_to_ptr.vmem [resolvable:$true] %s39
      %45 = dma.hbm_to_vmem [thread:$0]  %s38, 256, %s40, [#allocation6], 128, 128, 8
    $region9: #{tpu_custom_call.1} parent=1 // pred_fallthru
      _
    // Predicated region
    $region10: #{tpu_custom_call.1} parent=1 // pred_check
      _
    $region11: #{tpu_custom_call.1} parent=1 // pred_check_branch
      %47 = sbr.rel (0) target = $region13
    $region12: #{tpu_custom_call.1} parent=1 // pred_region
      %48 = dma.done [#allocation3], 256
    $region13: #{tpu_custom_call.1} parent=1 // pred_fallthru
      _
    // Predicated region
    $region14: #{tpu_custom_call.1} parent=1 // pred_check
      _
    $region15: #{tpu_custom_call.1} parent=1 // pred_check_branch
      %50 = sbr.rel (0) target = $region17
    $region16: #{tpu_custom_call.1} parent=1 // pred_region
      %51 = dma.done [#allocation6], 256
    $region17: #{tpu_custom_call.1} parent=1 // pred_fallthru
      _
    %s52 = sadd.s32 0, 0
    %p53 = scmp.lt.s32.totalorder %s52, 0
    %s54 = scalar_select %p53, %s52, 0
    %s55 = smul.u32 2, %s54
    %s56 = sadd.s32 0, 0
    %p57 = scmp.lt.s32.totalorder %s56, 0
    %s58 = scalar_select %p57, %s56, 0
    %s59 = smul.u32 2, %s58
    %p60 = scmp.eq.s32.totalorder 0, 0
    // Predicated region
    $region18: #{tpu_custom_call.1} parent=1 // pred_check
      %p61 = pneg %p60
    $region19: #{tpu_custom_call.1} parent=1 // pred_check_branch
      %63 = sbr.rel (%p61) target = $region21
    $region20: #{tpu_custom_call.1} parent=1 // pred_region
      %64 = vst [vmem:[#allocation7] sm:$0xff] 0.0
    $region21: #{tpu_custom_call.1} parent=1 // pred_fallthru
      _
    %v65 = vld [vmem:[#allocation2] sm:$0xff]
    %v66 = vld [vmem:[#allocation2 + $0x8] sm:$0xff]
    %v67 = vld [vmem:[#allocation5] sm:$0xff]
    %v68 = vld [vmem:[#allocation5 + $0x8] sm:$0xff]
    %v69 = vsub.f32 %v65, %v67
    %v70 = vsub.f32 %v66, %v68
    %v71 = vmul.f32 %v69, %v69
    %v72 = vmul.f32 %v70, %v70
    %v73 = vadd.f32 %v71, %v72
    %v74 = vld [vmem:[#allocation7] sm:$0xff]
    %v75 = vadd.f32 %v74, %v73
    %76 = vst [vmem:[#allocation7] sm:$0xff] %v75
    // Predicated region
    $region22: #{tpu_custom_call.1} parent=1 // pred_check
      _
    $region23: #{tpu_custom_call.1} parent=1 // pred_check_branch
      %78 = sbr.rel (0) target = $region25
    $region24: #{tpu_custom_call.1} parent=1 // pred_region
      %s80 = ssub.s32 128, 128
      %81 = vsyncadd [#allocation4], %s80
      %s83 = sshll.u32 [#allocation7], 4
      %s84 = int_to_ptr.vmem [resolvable:$true] %s83
      %86 = dma.vmem_to_hbm [thread:$0]  %s84, 128, %s2, [#allocation4]
    $region25: #{tpu_custom_call.1} parent=1 // pred_fallthru
      _
    // Predicated region
    $region26: #{tpu_custom_call.1} parent=1 // pred_check
      _
    $region27: #{tpu_custom_call.1} parent=1 // pred_check_branch
      %88 = sbr.rel (0) target = $region29
    $region28: #{tpu_custom_call.1} parent=1 // pred_region
      %89 = dma.done [#allocation4], 128
    $region29: #{tpu_custom_call.1} parent=1 // pred_fallthru
      _
    %90 = vsyncpa [#allocation3], 1
    %91 = vsyncpa [#allocation6], 1
    %92 = vsyncpa [#allocation4], 1

</llo_original>
